<compile_context>
chip_gen: v5e
topology: v5e:2x2
jax: 0.10.0
libtpu: 0.0.40
codegen_flags: <defaults>
</compile_context>

<pallas_src>
import jax
import jax.numpy as jnp
from jax.experimental import pallas as pl
from jax.experimental.pallas import tpu as pltpu

PAD_WIDTH = 128       # lane-dense padded width for hidden layers
OUT_WIDTH = 16        # narrow output stream (>= 10 real logits)
DEFAULT_TB = 4096     # batch tile (rows per grid step)


def _round_up(n, m):
    return ((n + m - 1) // m) * m


def mnist_mlp_kernel(x_ref, w1_ref, b1_ref, w2_ref, b2_ref,
                     w3_ref, b3_ref, w4_ref, b4_ref, o_ref):
    # x tile: (TB, 784) f32, cast to bf16 in-kernel; weights bf16, biases f32.
    # All dots accumulate in f32 on the MXU. Padded lanes (10..127) stay exactly 0
    # because padded weight rows/cols and biases are 0 and relu(0) == 0.
    x = x_ref[...].astype(jnp.bfloat16)

    h = jnp.dot(x, w1_ref[...], preferred_element_type=jnp.float32) + b1_ref[...]
    h = jnp.maximum(h, 0.0)

    h = jnp.dot(h.astype(jnp.bfloat16), w2_ref[...],
                preferred_element_type=jnp.float32) + b2_ref[...]
    h = jnp.maximum(h, 0.0)

    h = jnp.dot(h.astype(jnp.bfloat16), w3_ref[...],
                preferred_element_type=jnp.float32) + b3_ref[...]
    h = jnp.maximum(h, 0.0)

    h = jnp.dot(h.astype(jnp.bfloat16), w4_ref[...],
                preferred_element_type=jnp.float32) + b4_ref[...]

    # Only the first OUT_WIDTH lanes are ever real logits; writing a narrow
    # output slab cuts the HBM write (and the wrapper re-read) ~8x.
    o_ref[...] = h[:, :OUT_WIDTH].astype(o_ref.dtype)


def _pad_params(params):
    """Zero-pad all layer widths to PAD_WIDTH; weights bf16, biases f32."""
    (w1, b1), (w2, b2), (w3, b3), (w4, b4) = params
    P = PAD_WIDTH

    def pad_w(w, rows, cols):
        return jnp.pad(w, ((0, rows - w.shape[0]), (0, cols - w.shape[1])))

    def pad_b(b):
        return jnp.pad(b, ((0, 0), (0, P - b.shape[1])))

    return (pad_w(w1, 784, P).astype(jnp.bfloat16), pad_b(b1).astype(jnp.float32),
            pad_w(w2, P, P).astype(jnp.bfloat16), pad_b(b2).astype(jnp.float32),
            pad_w(w3, P, P).astype(jnp.bfloat16), pad_b(b3).astype(jnp.float32),
            pad_w(w4, P, P).astype(jnp.bfloat16), pad_b(b4).astype(jnp.float32))


def _choose_tb(B, tb_max):
    # At least 2 grid steps for medium/large batches (so megacore sharding on v7x
    # has work for both TensorCores); rounded to 16; never below 16.
    half = _round_up((B + 1) // 2, 16)
    return max(16, min(tb_max, half))


def mnist_net_forward(x, params, *, tb=DEFAULT_TB):
    """x: (B, 1, 28, 28) float32 (NCHW, like the PyTorch module). Returns (B, 10)."""
    B = x.shape[0]
    x_flat = x.reshape(B, -1)                       # torch.flatten(x, 1)
    assert x_flat.shape[1] == 784, "MNISTNet.fc1 expects 784 input features"

    TB = _choose_tb(B, tb)
    grid = (pl.cdiv(B, TB),)                        # ragged last tile handled by Pallas

    w1p, b1p, w2p, b2p, w3p, b3p, w4p, b4p = _pad_params(params)
    P = PAD_WIDTH

    const = lambda i: (0, 0)                        # weights/biases: fetched once, resident
    in_specs = [
        pl.BlockSpec((TB, 784), lambda i: (i, 0)),  # streamed per batch tile (f32)
        pl.BlockSpec((784, P), const),
        pl.BlockSpec((1, P), const),
        pl.BlockSpec((P, P), const),
        pl.BlockSpec((1, P), const),
        pl.BlockSpec((P, P), const),
        pl.BlockSpec((1, P), const),
        pl.BlockSpec((P, P), const),
        pl.BlockSpec((1, P), const),
    ]
    out_spec = pl.BlockSpec((TB, OUT_WIDTH), lambda i: (i, 0))

    out = pl.pallas_call(
        mnist_mlp_kernel,
        out_shape=jax.ShapeDtypeStruct((B, OUT_WIDTH), jnp.float32),
        grid=grid,
        in_specs=in_specs,
        out_specs=out_spec,
        compiler_params=pltpu.CompilerParams(
            dimension_semantics=("parallel",),      # megacore sharding on v7x
            vmem_limit_bytes=48 << 20,              # ~29 MB used at TB=4096; fits v7x 64 MiB
        ),
    )(x_flat, w1p, b1p, w2p, b2p, w3p, b3p, w4p, b4p)

    return out[:, :10]


def init_params(key):
    """Deterministic init matching MNISTNet.__init__ layer shapes.

    Mimics PyTorch nn.Linear default U(-1/sqrt(fan_in), 1/sqrt(fan_in)). Weights
    are (in_features, out_features); biases are (1, out_features).
    """
    dims = [(784, 10), (10, 10), (10, 10), (10, 10)]
    params = []
    for (fan_in, fan_out) in dims:
        key, kw, kb = jax.random.split(key, 3)
        bound = 1.0 / jnp.sqrt(fan_in)
        w = jax.random.uniform(kw, (fan_in, fan_out), jnp.float32, -bound, bound)
        b = jax.random.uniform(kb, (1, fan_out), jnp.float32, -bound, bound)
        params.append((w, b))
    return params


def reference_forward(x, params):
    """Pure-JAX f32 reference of the same forward pass (for correctness check)."""
    h = x.reshape(x.shape[0], -1)
    for i, (w, b) in enumerate(params):
        h = h @ w + b
        if i < len(params) - 1:
            h = jnp.maximum(h, 0.0)
    return h


if __name__ == "__main__":
    key = jax.random.PRNGKey(0)
    key, kx = jax.random.split(key)

    # Small batch of MNIST-shaped inputs (NCHW), consistent with fc1's 784 features.
    x = jax.random.normal(kx, (2, 1, 28, 28), jnp.float32)

    params = init_params(key)

    out = mnist_net_forward(x, params)
    out = jax.block_until_ready(out)

    ref = reference_forward(x, params)
    assert out.shape == (2, 10)
    # bf16 inputs/weights/hidden activations lose a few mantissa bits (accumulation
    # stays f32), so the tolerance is loosened vs. a pure-f32 pipeline.
    assert jnp.allclose(out, ref, atol=5e-2, rtol=5e-2), "Pallas kernel mismatch vs reference"

    print("KERNEL_OK")
</pallas_src>

<mosaic_0001>
module attributes {stable_mosaic.version = 11 : i64} {
  func.func @mnist_mlp_kernel(%arg0: i32, %arg1: memref<16x784xf32, #tpu.memory_space<vmem>>, %arg2: memref<784x128xbf16, #tpu.memory_space<vmem>>, %arg3: memref<1x128xf32, #tpu.memory_space<vmem>>, %arg4: memref<128x128xbf16, #tpu.memory_space<vmem>>, %arg5: memref<1x128xf32, #tpu.memory_space<vmem>>, %arg6: memref<128x128xbf16, #tpu.memory_space<vmem>>, %arg7: memref<1x128xf32, #tpu.memory_space<vmem>>, %arg8: memref<128x128xbf16, #tpu.memory_space<vmem>>, %arg9: memref<1x128xf32, #tpu.memory_space<vmem>>, %arg10: memref<16x16xf32, #tpu.memory_space<vmem>>) attributes {dimension_semantics = [#tpu.dimension_semantics<parallel>], iteration_bounds = array<i64: 1>, scalar_prefetch = 0 : i64, scratch_operands = 0 : i64, tpu.core_type = #tpu.core_type<tc>, window_params = [{transform_indices = @transform_0, window_bounds = array<i64: 16, 784>}, {pipeline_mode = #tpu.pipeline_mode<synchronous>, transform_indices = @transform_1, window_bounds = array<i64: 784, 128>}, {pipeline_mode = #tpu.pipeline_mode<synchronous>, transform_indices = @transform_2, window_bounds = array<i64: 1, 128>}, {pipeline_mode = #tpu.pipeline_mode<synchronous>, transform_indices = @transform_3, window_bounds = array<i64: 128, 128>}, {pipeline_mode = #tpu.pipeline_mode<synchronous>, transform_indices = @transform_4, window_bounds = array<i64: 1, 128>}, {pipeline_mode = #tpu.pipeline_mode<synchronous>, transform_indices = @transform_5, window_bounds = array<i64: 128, 128>}, {pipeline_mode = #tpu.pipeline_mode<synchronous>, transform_indices = @transform_6, window_bounds = array<i64: 1, 128>}, {pipeline_mode = #tpu.pipeline_mode<synchronous>, transform_indices = @transform_7, window_bounds = array<i64: 128, 128>}, {pipeline_mode = #tpu.pipeline_mode<synchronous>, transform_indices = @transform_8, window_bounds = array<i64: 1, 128>}, {transform_indices = @transform_9, window_bounds = array<i64: 16, 16>}]} {
    %c0 = arith.constant 0 : index
    %c0_0 = arith.constant 0 : index
    %0 = vector.load %arg1[%c0, %c0_0] : memref<16x784xf32, #tpu.memory_space<vmem>>, vector<16x784xf32>
    %1 = arith.truncf %0 : vector<16x784xf32> to vector<16x784xbf16>
    %c0_1 = arith.constant 0 : index
    %c0_2 = arith.constant 0 : index
    %2 = vector.load %arg2[%c0_1, %c0_2] : memref<784x128xbf16, #tpu.memory_space<vmem>>, vector<784x128xbf16>
    %cst = arith.constant dense<0.000000e+00> : vector<16x128xf32>
    %3 = tpu.matmul %1, %2, %cst {dimension_numbers = #tpu.dot_dimension_numbers<[1], [0], [0], [1], [0, 0, 1, 1], [], []>} : vector<16x784xbf16>, vector<784x128xbf16>, vector<16x128xf32> -> vector<16x128xf32>
    %c0_3 = arith.constant 0 : index
    %c0_4 = arith.constant 0 : index
    %4 = vector.load %arg3[%c0_3, %c0_4] : memref<1x128xf32, #tpu.memory_space<vmem>>, vector<1x128xf32>
    %5 = vector.broadcast %4 : vector<1x128xf32> to vector<16x128xf32>
    %6 = arith.addf %3, %5 : vector<16x128xf32>
    %cst_5 = arith.constant 0.000000e+00 : f32
    %7 = vector.broadcast %cst_5 : f32 to vector<16x128xf32>
    %8 = arith.maximumf %6, %7 : vector<16x128xf32>
    %9 = arith.truncf %8 : vector<16x128xf32> to vector<16x128xbf16>
    %c0_6 = arith.constant 0 : index
    %c0_7 = arith.constant 0 : index
    %10 = vector.load %arg4[%c0_6, %c0_7] : memref<128x128xbf16, #tpu.memory_space<vmem>>, vector<128x128xbf16>
    %cst_8 = arith.constant dense<0.000000e+00> : vector<16x128xf32>
    %11 = tpu.matmul %9, %10, %cst_8 {dimension_numbers = #tpu.dot_dimension_numbers<[1], [0], [0], [1], [0, 0, 1, 1], [], []>} : vector<16x128xbf16>, vector<128x128xbf16>, vector<16x128xf32> -> vector<16x128xf32>
    %c0_9 = arith.constant 0 : index
    %c0_10 = arith.constant 0 : index
    %12 = vector.load %arg5[%c0_9, %c0_10] : memref<1x128xf32, #tpu.memory_space<vmem>>, vector<1x128xf32>
    %13 = vector.broadcast %12 : vector<1x128xf32> to vector<16x128xf32>
    %14 = arith.addf %11, %13 : vector<16x128xf32>
    %cst_11 = arith.constant 0.000000e+00 : f32
    %15 = vector.broadcast %cst_11 : f32 to vector<16x128xf32>
    %16 = arith.maximumf %14, %15 : vector<16x128xf32>
    %17 = arith.truncf %16 : vector<16x128xf32> to vector<16x128xbf16>
    %c0_12 = arith.constant 0 : index
    %c0_13 = arith.constant 0 : index
    %18 = vector.load %arg6[%c0_12, %c0_13] : memref<128x128xbf16, #tpu.memory_space<vmem>>, vector<128x128xbf16>
    %cst_14 = arith.constant dense<0.000000e+00> : vector<16x128xf32>
    %19 = tpu.matmul %17, %18, %cst_14 {dimension_numbers = #tpu.dot_dimension_numbers<[1], [0], [0], [1], [0, 0, 1, 1], [], []>} : vector<16x128xbf16>, vector<128x128xbf16>, vector<16x128xf32> -> vector<16x128xf32>
    %c0_15 = arith.constant 0 : index
    %c0_16 = arith.constant 0 : index
    %20 = vector.load %arg7[%c0_15, %c0_16] : memref<1x128xf32, #tpu.memory_space<vmem>>, vector<1x128xf32>
    %21 = vector.broadcast %20 : vector<1x128xf32> to vector<16x128xf32>
    %22 = arith.addf %19, %21 : vector<16x128xf32>
    %cst_17 = arith.constant 0.000000e+00 : f32
    %23 = vector.broadcast %cst_17 : f32 to vector<16x128xf32>
    %24 = arith.maximumf %22, %23 : vector<16x128xf32>
    %25 = arith.truncf %24 : vector<16x128xf32> to vector<16x128xbf16>
    %c0_18 = arith.constant 0 : index
    %c0_19 = arith.constant 0 : index
    %26 = vector.load %arg8[%c0_18, %c0_19] : memref<128x128xbf16, #tpu.memory_space<vmem>>, vector<128x128xbf16>
    %cst_20 = arith.constant dense<0.000000e+00> : vector<16x128xf32>
    %27 = tpu.matmul %25, %26, %cst_20 {dimension_numbers = #tpu.dot_dimension_numbers<[1], [0], [0], [1], [0, 0, 1, 1], [], []>} : vector<16x128xbf16>, vector<128x128xbf16>, vector<16x128xf32> -> vector<16x128xf32>
    %c0_21 = arith.constant 0 : index
    %c0_22 = arith.constant 0 : index
    %28 = vector.load %arg9[%c0_21, %c0_22] : memref<1x128xf32, #tpu.memory_space<vmem>>, vector<1x128xf32>
    %29 = vector.broadcast %28 : vector<1x128xf32> to vector<16x128xf32>
    %30 = arith.addf %27, %29 : vector<16x128xf32>
    %31 = vector.extract_strided_slice %30 {offsets = [0, 0], sizes = [16, 16], strides = [1, 1]} : vector<16x128xf32> to vector<16x16xf32>
    %c0_23 = arith.constant 0 : index
    %c0_24 = arith.constant 0 : index
    %32 = vector.load %arg10[%c0_23, %c0_24] : memref<16x16xf32, #tpu.memory_space<vmem>>, vector<16x16xf32>
    tpu.vector_store %arg10[%c0_23, %c0_24], %31 {strides = array<i32>} : memref<16x16xf32, #tpu.memory_space<vmem>>, vector<16x16xf32>,
    return
  }
  func.func @transform_0(%arg0: i32) -> (i32, i32) {
    %c0_i32 = arith.constant 0 : i32
    %c0_i32_0 = arith.constant 0 : i32
    return %arg0, %c0_i32 : i32, i32
  }
  func.func @transform_1(%arg0: i32) -> (i32, i32) {
    %c0_i32 = arith.constant 0 : i32
    %c0_i32_0 = arith.constant 0 : i32
    %c0_i32_1 = arith.constant 0 : i32
    return %c0_i32, %c0_i32_0 : i32, i32
  }
  func.func @transform_2(%arg0: i32) -> (i32, i32) {
    %c0_i32 = arith.constant 0 : i32
    %c0_i32_0 = arith.constant 0 : i32
    %c0_i32_1 = arith.constant 0 : i32
    return %c0_i32, %c0_i32_0 : i32, i32
  }
  func.func @transform_3(%arg0: i32) -> (i32, i32) {
    %c0_i32 = arith.constant 0 : i32
    %c0_i32_0 = arith.constant 0 : i32
    %c0_i32_1 = arith.constant 0 : i32
    return %c0_i32, %c0_i32_0 : i32, i32
  }
  func.func @transform_4(%arg0: i32) -> (i32, i32) {
    %c0_i32 = arith.constant 0 : i32
    %c0_i32_0 = arith.constant 0 : i32
    %c0_i32_1 = arith.constant 0 : i32
    return %c0_i32, %c0_i32_0 : i32, i32
  }
  func.func @transform_5(%arg0: i32) -> (i32, i32) {
    %c0_i32 = arith.constant 0 : i32
    %c0_i32_0 = arith.constant 0 : i32
    %c0_i32_1 = arith.constant 0 : i32
    return %c0_i32, %c0_i32_0 : i32, i32
  }
  func.func @transform_6(%arg0: i32) -> (i32, i32) {
    %c0_i32 = arith.constant 0 : i32
    %c0_i32_0 = arith.constant 0 : i32
    %c0_i32_1 = arith.constant 0 : i32
    return %c0_i32, %c0_i32_0 : i32, i32
  }
  func.func @transform_7(%arg0: i32) -> (i32, i32) {
    %c0_i32 = arith.constant 0 : i32
    %c0_i32_0 = arith.constant 0 : i32
    %c0_i32_1 = arith.constant 0 : i32
    return %c0_i32, %c0_i32_0 : i32, i32
  }
  func.func @transform_8(%arg0: i32) -> (i32, i32) {
    %c0_i32 = arith.constant 0 : i32
    %c0_i32_0 = arith.constant 0 : i32
    %c0_i32_1 = arith.constant 0 : i32
    return %c0_i32, %c0_i32_0 : i32, i32
  }
  func.func @transform_9(%arg0: i32) -> (i32, i32) {
    %c0_i32 = arith.constant 0 : i32
    %c0_i32_0 = arith.constant 0 : i32
    return %arg0, %c0_i32 : i32, i32
  }
}

</mosaic_0001>

<llo_original>
// kernel: tpu_custom_call.1
$region0: #{tpu_custom_call.1}
  #allocation0 [shape = 'u32[]', space=smem, size = 0x4, offset = 0x4, fixed_abs, tag = 'smem constant byte address 0x4 - core index']
  #allocation1 [shape = 'u32[72,128]{1,0:T(1,128)}', space=vmem, size = 0x9000, scoped, tag = 'internal scratch']
  %s0 = inlined_call_operand.hbm [shape: f32[2,784], index: 0, kind: input, shape index: {}]
  %s1 = inlined_call_operand.hbm [shape: bf16[784,128], index: 1, kind: input, shape index: {}]
  %s2 = inlined_call_operand.vmem [shape: f32[1,128], index: 2, kind: input, shape index: {}]
  %s3 = inlined_call_operand.hbm [shape: bf16[128,128], index: 3, kind: input, shape index: {}]
  %s4 = inlined_call_operand.vmem [shape: f32[1,128], index: 4, kind: input, shape index: {}]
  %s5 = inlined_call_operand.hbm [shape: bf16[128,128], index: 5, kind: input, shape index: {}]
  %s6 = inlined_call_operand.vmem [shape: f32[1,128], index: 6, kind: input, shape index: {}]
  %s7 = inlined_call_operand.hbm [shape: bf16[128,128], index: 7, kind: input, shape index: {}]
  %s8 = inlined_call_operand.vmem [shape: f32[1,128], index: 8, kind: input, shape index: {}]
  %s9 = inlined_call_operand.hbm [shape: f32[2,16], index: 9, kind: output, shape index: {}]
  %s10 = sld [smem:[#allocation0]]
  $region66: #{tpu_custom_call.1} parent=0
    _
  %s12 = ssub.s32 1, %s10
  %s13 = scalar_select 0, %s12, %s10
  $region1: #{tpu_custom_call.1} parent=0
    #allocation2 [shape = 'u8[57344]{0}', space=vmem, size = 0xe000, scoped, tag = 'input window, operand 0, single buffered']
    #allocation3 [shape = 's32[1]{0}', space=sflag, size = 0x4, scoped, tag = 'scoped memory for tpu_custom_call.1']
    #allocation4 [shape = 's32[1]{0}', space=sflag, size = 0x4, scoped, tag = 'scoped memory for tpu_custom_call.1']
    #allocation5 [shape = 'u8[200704]{0}', space=vmem, size = 0x31000, scoped, tag = 'input window, operand 1, single buffered']
    #allocation6 [shape = 's32[1]{0}', space=sflag, size = 0x4, scoped, tag = 'scoped memory for tpu_custom_call.1']
    #allocation7 [shape = 'u8[32768]{0}', space=vmem, size = 0x8000, scoped, tag = 'input window, operand 3, single buffered']
    #allocation8 [shape = 'u8[32768]{0}', space=vmem, size = 0x8000, scoped, tag = 'input window, operand 5, single buffered']
    #allocation9 [shape = 's32[1]{0}', space=sflag, size = 0x4, scoped, tag = 'scoped memory for tpu_custom_call.1']
    #allocation10 [shape = 'u8[32768]{0}', space=vmem, size = 0x8000, scoped, tag = 'input window, operand 7, single buffered']
    #allocation11 [shape = 'u8[8192]{0}', space=vmem, size = 0x2000, scoped, tag = 'output window, operand 0, single buffered']
    %14 = vsyncpa [#allocation3], 0
    %15 = vsyncpa [#allocation6], 0
    %16 = vsyncpa [#allocation9], 0
    %17 = vsyncpa [#allocation4], 0
    // Predicated region
    $region2: #{tpu_custom_call.1} parent=1 // pred_check
      _
    $region3: #{tpu_custom_call.1} parent=1 // pred_check_branch
      %19 = sbr.rel (0) target = $region5
    $region4: #{tpu_custom_call.1} parent=1 // pred_region
      %21 = vsyncadd [#allocation3], 1568
      %s22 = sshll.u32 %s0, 4
      %s23 = int_to_ptr.hbm [resolvable:$true] %s22
      %s24 = sshll.u32 [#allocation2], 4
      %s25 = int_to_ptr.vmem [resolvable:$true] %s24
      %30 = dma.hbm_to_vmem [thread:$0]  %s23, 224, %s25, [#allocation3], 224, 224, 14
    $region5: #{tpu_custom_call.1} parent=1 // pred_fallthru
      _
    // Predicated region
    $region6: #{tpu_custom_call.1} parent=1 // pred_check
      _
    $region7: #{tpu_custom_call.1} parent=1 // pred_check_branch
      %32 = sbr.rel (0) target = $region9
    $region8: #{tpu_custom_call.1} parent=1 // pred_region
      %34 = vsyncadd [#allocation6], 0
      %s35 = sshll.u32 %s1, 4
      %s36 = int_to_ptr.hbm [resolvable:$true] %s35
      %s37 = sshll.u32 [#allocation5], 4
      %s38 = int_to_ptr.vmem [resolvable:$true] %s37
      %43 = dma.hbm_to_vmem [thread:$0]  %s36, 6272, %s38, [#allocation6], 64, 64, 4
    $region9: #{tpu_custom_call.1} parent=1 // pred_fallthru
      _
    // Predicated region
    $region10: #{tpu_custom_call.1} parent=1 // pred_check
      _
    $region11: #{tpu_custom_call.1} parent=1 // pred_check_branch
      %45 = sbr.rel (0) target = $region13
    $region12: #{tpu_custom_call.1} parent=1 // pred_region
      _
    $region13: #{tpu_custom_call.1} parent=1 // pred_fallthru
      _
    // Predicated region
    $region14: #{tpu_custom_call.1} parent=1 // pred_check
      _
    $region15: #{tpu_custom_call.1} parent=1 // pred_check_branch
      %47 = sbr.rel (0) target = $region17
    $region16: #{tpu_custom_call.1} parent=1 // pred_region
      %49 = vsyncadd [#allocation6], 0
      %s50 = sshll.u32 %s3, 4
      %s51 = int_to_ptr.hbm [resolvable:$true] %s50
      %s52 = sshll.u32 [#allocation7], 4
      %s53 = int_to_ptr.vmem [resolvable:$true] %s52
      %58 = dma.hbm_to_vmem [thread:$0]  %s51, 1024, %s53, [#allocation6], 64, 64, 4
    $region17: #{tpu_custom_call.1} parent=1 // pred_fallthru
      _
    // Predicated region
    $region18: #{tpu_custom_call.1} parent=1 // pred_check
      _
    $region19: #{tpu_custom_call.1} parent=1 // pred_check_branch
      %60 = sbr.rel (0) target = $region21
    $region20: #{tpu_custom_call.1} parent=1 // pred_region
      _
    $region21: #{tpu_custom_call.1} parent=1 // pred_fallthru
      _
    // Predicated region
    $region22: #{tpu_custom_call.1} parent=1 // pred_check
      _
    $region23: #{tpu_custom_call.1} parent=1 // pred_check_branch
      %62 = sbr.rel (0) target = $region25
    $region24: #{tpu_custom_call.1} parent=1 // pred_region
      %64 = vsyncadd [#allocation9], 0
      %s65 = sshll.u32 %s5, 4
      %s66 = int_to_ptr.hbm [resolvable:$true] %s65
      %s67 = sshll.u32 [#allocation8], 4
      %s68 = int_to_ptr.vmem [resolvable:$true] %s67
      %73 = dma.hbm_to_vmem [thread:$0]  %s66, 1024, %s68, [#allocation9], 64, 64, 4
    $region25: #{tpu_custom_call.1} parent=1 // pred_fallthru
      _
    // Predicated region
    $region26: #{tpu_custom_call.1} parent=1 // pred_check
      _
    $region27: #{tpu_custom_call.1} parent=1 // pred_check_branch
      %75 = sbr.rel (0) target = $region29
    $region28: #{tpu_custom_call.1} parent=1 // pred_region
      _
    $region29: #{tpu_custom_call.1} parent=1 // pred_fallthru
      _
    // Predicated region
    $region30: #{tpu_custom_call.1} parent=1 // pred_check
      _
    $region31: #{tpu_custom_call.1} parent=1 // pred_check_branch
      %77 = sbr.rel (0) target = $region33
    $region32: #{tpu_custom_call.1} parent=1 // pred_region
      %79 = vsyncadd [#allocation9], 0
      %s80 = sshll.u32 %s7, 4
      %s81 = int_to_ptr.hbm [resolvable:$true] %s80
      %s82 = sshll.u32 [#allocation10], 4
      %s83 = int_to_ptr.vmem [resolvable:$true] %s82
      %88 = dma.hbm_to_vmem [thread:$0]  %s81, 1024, %s83, [#allocation9], 64, 64, 4
    $region33: #{tpu_custom_call.1} parent=1 // pred_fallthru
      _
    // Predicated region
    $region34: #{tpu_custom_call.1} parent=1 // pred_check
      _
    $region35: #{tpu_custom_call.1} parent=1 // pred_check_branch
      %90 = sbr.rel (0) target = $region37
    $region36: #{tpu_custom_call.1} parent=1 // pred_region
      _
    $region37: #{tpu_custom_call.1} parent=1 // pred_fallthru
      _
    // Predicated region
    $region38: #{tpu_custom_call.1} parent=1 // pred_check
      _
    $region39: #{tpu_custom_call.1} parent=1 // pred_check_branch
      %92 = sbr.rel (0) target = $region41
    $region40: #{tpu_custom_call.1} parent=1 // pred_region
      %94 = dma.done [#allocation3], 1792
    $region41: #{tpu_custom_call.1} parent=1 // pred_fallthru
      _
    // Predicated region
    $region42: #{tpu_custom_call.1} parent=1 // pred_check
      _
    $region43: #{tpu_custom_call.1} parent=1 // pred_check_branch
      %96 = sbr.rel (0) target = $region45
    $region44: #{tpu_custom_call.1} parent=1 // pred_region
      %98 = dma.done [#allocation6], 6272
    $region45: #{tpu_custom_call.1} parent=1 // pred_fallthru
      _
    // Predicated region
    $region46: #{tpu_custom_call.1} parent=1 // pred_check
      _
    $region47: #{tpu_custom_call.1} parent=1 // pred_check_branch
      %100 = sbr.rel (0) target = $region49
    $region48: #{tpu_custom_call.1} parent=1 // pred_region
      %102 = dma.done [#allocation6], 1024
    $region49: #{tpu_custom_call.1} parent=1 // pred_fallthru
      _
    // Predicated region
    $region50: #{tpu_custom_call.1} parent=1 // pred_check
      _
    $region51: #{tpu_custom_call.1} parent=1 // pred_check_branch
      %104 = sbr.rel (0) target = $region53
    $region52: #{tpu_custom_call.1} parent=1 // pred_region
      %106 = dma.done [#allocation9], 1024
    $region53: #{tpu_custom_call.1} parent=1 // pred_fallthru
      _
    // Predicated region
    $region54: #{tpu_custom_call.1} parent=1 // pred_check
      _
    $region55: #{tpu_custom_call.1} parent=1 // pred_check_branch
      %108 = sbr.rel (0) target = $region57
    $region56: #{tpu_custom_call.1} parent=1 // pred_region
      %110 = dma.done [#allocation9], 1024
    $region57: #{tpu_custom_call.1} parent=1 // pred_fallthru
      _
    %v112 = vld [vmem:[#allocation2] sm:$0xff]
    %v113 = vld [vmem:[#allocation2 + $0x8] sm:$0x3f]
    %v114 = vld [vmem:[#allocation2 + $0xe] sm:$0xff]
    %v115 = vld [vmem:[#allocation2 + $0x16] sm:$0x3f]
    %v116 = vld [vmem:[#allocation2 + $0x1c] sm:$0xff]
    %v117 = vld [vmem:[#allocation2 + $0x24] sm:$0x3f]
    %v118 = vld [vmem:[#allocation2 + $0x2a] sm:$0xff]
    %v119 = vld [vmem:[#allocation2 + $0x32] sm:$0x3f]
    %v120 = vld [vmem:[#allocation2 + $0x38] sm:$0xff]
    %v121 = vld [vmem:[#allocation2 + $0x40] sm:$0x3f]
    %v122 = vld [vmem:[#allocation2 + $0x46] sm:$0xff]
    %v123 = vld [vmem:[#allocation2 + $0x4e] sm:$0x3f]
    %v124 = vld [vmem:[#allocation2 + $0x54] sm:$0xff]
    %v125 = vld [vmem:[#allocation2 + $0x5c] sm:$0x3f]
    %v126 = vld [vmem:[#allocation2 + $0x62] sm:$0xff]
    %v127 = vld [vmem:[#allocation2 + $0x6a] sm:$0x3f]
    %144 = vst [vmem:[#allocation1] ss:$4 sm:$0xff] %v112
    %s145 = scalar_lea.vmem [#allocation1], 1
    %146 = vst [vmem:[%s145] ss:$4 sm:$0xff] %v114
    %s147 = scalar_lea.vmem [#allocation1], 2
    %148 = vst [vmem:[%s147] ss:$4 sm:$0xff] %v116
    %s149 = scalar_lea.vmem [#allocation1], 3
    %150 = vst [vmem:[%s149] ss:$4 sm:$0xff] %v118
    %s151 = scalar_lea.vmem [#allocation1], 32
    %152 = vst [vmem:[%s151] ss:$4 sm:$0xff] %v113
    %s153 = scalar_lea.vmem [#allocation1], 33
    %154 = vst [vmem:[%s153] ss:$4 sm:$0xff] %v115
    %s155 = scalar_lea.vmem [#allocation1], 34
    %156 = vst [vmem:[%s155] ss:$4 sm:$0xff] %v117
    %s157 = scalar_lea.vmem [#allocation1], 35
    %158 = vst [vmem:[%s157] ss:$4 sm:$0xff] %v119
    %v159 = vld.sshfl [vmem:[#allocation1] sm:$0xff pattern:$0x73625140]
    %v160 = vld.sshfl [vmem:[#allocation1 + $0x8] sm:$0xff pattern:$0x73625140]
    %v161 = vld.sshfl [vmem:[#allocation1 + $0x10] sm:$0xff pattern:$0x73625140]
    %v162 = vld.sshfl [vmem:[#allocation1 + $0x18] sm:$0xff pattern:$0x73625140]
    %v163 = vld.sshfl [vmem:[#allocation1 + $0x20] sm:$0xff pattern:$0x73625140]
    %v164 = vld.sshfl [vmem:[#allocation1 + $0x28] sm:$0xff pattern:$0x73625140]
    %v165 = vld.sshfl [vmem:[#allocation1 + $0x30] sm:$0xff pattern:$0x73625140]
    %166 = vst [vmem:[#allocation1] ss:$4 sm:$0xff] %v120
    %167 = vst [vmem:[%s145] ss:$4 sm:$0xff] %v122
    %168 = vst [vmem:[%s147] ss:$4 sm:$0xff] %v124
    %169 = vst [vmem:[%s149] ss:$4 sm:$0xff] %v126
    %170 = vst [vmem:[%s151] ss:$4 sm:$0xff] %v121
    %171 = vst [vmem:[%s153] ss:$4 sm:$0xff] %v123
    %172 = vst [vmem:[%s155] ss:$4 sm:$0xff] %v125
    %173 = vst [vmem:[%s157] ss:$4 sm:$0xff] %v127
    %v174 = vld.sshfl [vmem:[#allocation1] sm:$0xff pattern:$0x73625140]
    %v175 = vld.sshfl [vmem:[#allocation1 + $0x8] sm:$0xff pattern:$0x73625140]
    %v176 = vld.sshfl [vmem:[#allocation1 + $0x10] sm:$0xff pattern:$0x73625140]
    %v177 = vld.sshfl [vmem:[#allocation1 + $0x18] sm:$0xff pattern:$0x73625140]
    %v178 = vld.sshfl [vmem:[#allocation1 + $0x20] sm:$0xff pattern:$0x73625140]
    %v179 = vld.sshfl [vmem:[#allocation1 + $0x28] sm:$0xff pattern:$0x73625140]
    %v180 = vld.sshfl [vmem:[#allocation1 + $0x30] sm:$0xff pattern:$0x73625140]
    %v195 = vpack.c.bf16 %v174, %v159
    %v196 = vpack.c.bf16 %v175, %v160
    %v197 = vpack.c.bf16 %v176, %v161
    %v198 = vpack.c.bf16 %v177, %v162
    %v199 = vpack.c.bf16 %v178, %v163
    %v200 = vpack.c.bf16 %v179, %v164
    %v201 = vpack.c.bf16 %v180, %v165
    %v202 = vld [vmem:[#allocation5] sm:$0xf]
    %v203 = vld [vmem:[#allocation5 + $0x4] sm:$0xf]
    %v204 = vld [vmem:[#allocation5 + $0x8] sm:$0xf]
    %v205 = vld [vmem:[#allocation5 + $0xc] sm:$0xf]
    %v206 = vld [vmem:[#allocation5 + $0x10] sm:$0xf]
    %v207 = vld [vmem:[#allocation5 + $0x14] sm:$0xf]
    %v208 = vld [vmem:[#allocation5 + $0x18] sm:$0xf]
    %v209 = vld [vmem:[#allocation5 + $0x1c] sm:$0xf]
    %v210 = vld [vmem:[#allocation5 + $0x20] sm:$0xf]
    %v211 = vld [vmem:[#allocation5 + $0x24] sm:$0xf]
    %v212 = vld [vmem:[#allocation5 + $0x28] sm:$0xf]
    %v213 = vld [vmem:[#allocation5 + $0x2c] sm:$0xf]
    %v214 = vld [vmem:[#allocation5 + $0x30] sm:$0xf]
    %v215 = vld [vmem:[#allocation5 + $0x34] sm:$0xf]
    %v216 = vld [vmem:[#allocation5 + $0x38] sm:$0xf]
    %v217 = vld [vmem:[#allocation5 + $0x3c] sm:$0xf]
    %v218 = vld [vmem:[#allocation5 + $0x40] sm:$0xf]
    %v219 = vld [vmem:[#allocation5 + $0x44] sm:$0xf]
    %v220 = vld [vmem:[#allocation5 + $0x48] sm:$0xf]
    %v221 = vld [vmem:[#allocation5 + $0x4c] sm:$0xf]
    %v222 = vld [vmem:[#allocation5 + $0x50] sm:$0xf]
    %v223 = vld [vmem:[#allocation5 + $0x54] sm:$0xf]
    %v224 = vld [vmem:[#allocation5 + $0x58] sm:$0xf]
    %v225 = vld [vmem:[#allocation5 + $0x5c] sm:$0xf]
    %v226 = vld [vmem:[#allocation5 + $0x60] sm:$0xf]
    %v227 = vld [vmem:[#allocation5 + $0x64] sm:$0xf]
    %v228 = vld [vmem:[#allocation5 + $0x68] sm:$0xf]
    %v229 = vld [vmem:[#allocation5 + $0x6c] sm:$0xf]
    %v230 = vld [vmem:[#allocation5 + $0x70] sm:$0xf]
    %v231 = vld [vmem:[#allocation5 + $0x74] sm:$0xf]
    %v232 = vld [vmem:[#allocation5 + $0x78] sm:$0xf]
    %v233 = vld [vmem:[#allocation5 + $0x7c] sm:$0xf]
    %v234 = vld [vmem:[#allocation5 + $0x80] sm:$0xf]
    %v235 = vld [vmem:[#allocation5 + $0x84] sm:$0xf]
    %v236 = vld [vmem:[#allocation5 + $0x88] sm:$0xf]
    %v237 = vld [vmem:[#allocation5 + $0x8c] sm:$0xf]
    %v238 = vld [vmem:[#allocation5 + $0x90] sm:$0xf]
    %v239 = vld [vmem:[#allocation5 + $0x94] sm:$0xf]
    %v240 = vld [vmem:[#allocation5 + $0x98] sm:$0xf]
    %v241 = vld [vmem:[#allocation5 + $0x9c] sm:$0xf]
    %v242 = vld [vmem:[#allocation5 + $0xa0] sm:$0xf]
    %v243 = vld [vmem:[#allocation5 + $0xa4] sm:$0xf]
    %v244 = vld [vmem:[#allocation5 + $0xa8] sm:$0xf]
    %v245 = vld [vmem:[#allocation5 + $0xac] sm:$0xf]
    %v246 = vld [vmem:[#allocation5 + $0xb0] sm:$0xf]
    %v247 = vld [vmem:[#allocation5 + $0xb4] sm:$0xf]
    %v248 = vld [vmem:[#allocation5 + $0xb8] sm:$0xf]
    %v249 = vld [vmem:[#allocation5 + $0xbc] sm:$0xf]
    %v250 = vld [vmem:[#allocation5 + $0xc0] sm:$0xf]
    %v251 = vld [vmem:[#allocation5 + $0xc4] sm:$0xf]
    %v252 = vld [vmem:[#allocation5 + $0xc8] sm:$0xf]
    %v253 = vld [vmem:[#allocation5 + $0xcc] sm:$0xf]
    %v254 = vld [vmem:[#allocation5 + $0xd0] sm:$0xf]
    %v255 = vld [vmem:[#allocation5 + $0xd4] sm:$0xf]
    %v256 = vld [vmem:[#allocation5 + $0xd8] sm:$0xf]
    %v257 = vld [vmem:[#allocation5 + $0xdc] sm:$0xf]
    %v258 = vld [vmem:[#allocation5 + $0xe0] sm:$0xf]
    %v259 = vld [vmem:[#allocation5 + $0xe4] sm:$0xf]
    %v260 = vld [vmem:[#allocation5 + $0xe8] sm:$0xf]
    %v261 = vld [vmem:[#allocation5 + $0xec] sm:$0xf]
    %v262 = vld [vmem:[#allocation5 + $0xf0] sm:$0xf]
    %v263 = vld [vmem:[#allocation5 + $0xf4] sm:$0xf]
    %v264 = vld [vmem:[#allocation5 + $0xf8] sm:$0xf]
    %v265 = vld [vmem:[#allocation5 + $0xfc] sm:$0xf]
    %v266 = vld [vmem:[#allocation5 + $0x100] sm:$0xf]
    %v267 = vld [vmem:[#allocation5 + $0x104] sm:$0xf]
    %v268 = vld [vmem:[#allocation5 + $0x108] sm:$0xf]
    %v269 = vld [vmem:[#allocation5 + $0x10c] sm:$0xf]
    %v270 = vld [vmem:[#allocation5 + $0x110] sm:$0xf]
    %v271 = vld [vmem:[#allocation5 + $0x114] sm:$0xf]
    %v272 = vld [vmem:[#allocation5 + $0x118] sm:$0xf]
    %v273 = vld [vmem:[#allocation5 + $0x11c] sm:$0xf]
    %v274 = vld [vmem:[#allocation5 + $0x120] sm:$0xf]
    %v275 = vld [vmem:[#allocation5 + $0x124] sm:$0xf]
    %v276 = vld [vmem:[#allocation5 + $0x128] sm:$0xf]
    %v277 = vld [vmem:[#allocation5 + $0x12c] sm:$0xf]
    %v278 = vld [vmem:[#allocation5 + $0x130] sm:$0xf]
    %v279 = vld [vmem:[#allocation5 + $0x134] sm:$0xf]
    %v280 = vld [vmem:[#allocation5 + $0x138] sm:$0xf]
    %v281 = vld [vmem:[#allocation5 + $0x13c] sm:$0xf]
    %v282 = vld [vmem:[#allocation5 + $0x140] sm:$0xf]
    %v283 = vld [vmem:[#allocation5 + $0x144] sm:$0xf]
    %v284 = vld [vmem:[#allocation5 + $0x148] sm:$0xf]
    %v285 = vld [vmem:[#allocation5 + $0x14c] sm:$0xf]
    %v286 = vld [vmem:[#allocation5 + $0x150] sm:$0xf]
    %v287 = vld [vmem:[#allocation5 + $0x154] sm:$0xf]
    %v288 = vld [vmem:[#allocation5 + $0x158] sm:$0xf]
    %v289 = vld [vmem:[#allocation5 + $0x15c] sm:$0xf]
    %v290 = vld [vmem:[#allocation5 + $0x160] sm:$0xf]
    %v291 = vld [vmem:[#allocation5 + $0x164] sm:$0xf]
    %v292 = vld [vmem:[#allocation5 + $0x168] sm:$0xf]
    %v293 = vld [vmem:[#allocation5 + $0x16c] sm:$0xf]
    %v294 = vld [vmem:[#allocation5 + $0x170] sm:$0xf]
    %v295 = vld [vmem:[#allocation5 + $0x174] sm:$0xf]
    %v296 = vld [vmem:[#allocation5 + $0x178] sm:$0xf]
    %v297 = vld [vmem:[#allocation5 + $0x17c] sm:$0xf]
    %v298 = vld [vmem:[#allocation5 + $0x180] sm:$0xf]
    %v299 = vld [vmem:[#allocation5 + $0x184] sm:$0xf]
    %v300 = vld [vmem:[%s2] sm:$0x1]
    %v302 = vperm.slane %v300, 0
    %v402 = vunpack.c.l.b16 %v202
    %v403 = vunpack.c.l.b16 %v203
    %v404 = vunpack.c.l.b16 %v204
    %v405 = vunpack.c.l.b16 %v205
    %v406 = vunpack.c.l.b16 %v206
    %v407 = vunpack.c.l.b16 %v207
    %v408 = vunpack.c.l.b16 %v208
    %v409 = vunpack.c.l.b16 %v209
    %v410 = vunpack.c.l.b16 %v210
    %v411 = vunpack.c.l.b16 %v211
    %v412 = vunpack.c.l.b16 %v212
    %v413 = vunpack.c.l.b16 %v213
    %v414 = vunpack.c.l.b16 %v214
    %v415 = vunpack.c.l.b16 %v215
    %v416 = vunpack.c.l.b16 %v216
    %v417 = vunpack.c.l.b16 %v217
    %v418 = vunpack.c.l.b16 %v218
    %v419 = vunpack.c.l.b16 %v219
    %v420 = vunpack.c.l.b16 %v220
    %v421 = vunpack.c.l.b16 %v221
    %v422 = vunpack.c.l.b16 %v222
    %v423 = vunpack.c.l.b16 %v223
    %v424 = vunpack.c.l.b16 %v224
    %v425 = vunpack.c.l.b16 %v225
    %v426 = vunpack.c.l.b16 %v226
    %v427 = vunpack.c.l.b16 %v227
    %v428 = vunpack.c.l.b16 %v228
    %v429 = vunpack.c.l.b16 %v229
    %v430 = vunpack.c.l.b16 %v230
    %v431 = vunpack.c.l.b16 %v231
    %v432 = vunpack.c.l.b16 %v232
    %v433 = vunpack.c.l.b16 %v233
    %v434 = vunpack.c.l.b16 %v234
    %v435 = vunpack.c.l.b16 %v235
    %v436 = vunpack.c.l.b16 %v236
    %v437 = vunpack.c.l.b16 %v237
    %v438 = vunpack.c.l.b16 %v238
    %v439 = vunpack.c.l.b16 %v239
    %v440 = vunpack.c.l.b16 %v240
    %v441 = vunpack.c.l.b16 %v241
    %v442 = vunpack.c.l.b16 %v242
    %v443 = vunpack.c.l.b16 %v243
    %v444 = vunpack.c.l.b16 %v244
    %v445 = vunpack.c.l.b16 %v245
    %v446 = vunpack.c.l.b16 %v246
    %v447 = vunpack.c.l.b16 %v247
    %v448 = vunpack.c.l.b16 %v248
    %v449 = vunpack.c.l.b16 %v249
    %v450 = vunpack.c.l.b16 %v250
    %v451 = vunpack.c.l.b16 %v251
    %v452 = vunpack.c.l.b16 %v252
    %v453 = vunpack.c.l.b16 %v253
    %v454 = vunpack.c.l.b16 %v254
    %v455 = vunpack.c.l.b16 %v255
    %v456 = vunpack.c.l.b16 %v256
    %v457 = vunpack.c.l.b16 %v257
    %v458 = vunpack.c.l.b16 %v258
    %v459 = vunpack.c.l.b16 %v259
    %v460 = vunpack.c.l.b16 %v260
    %v461 = vunpack.c.l.b16 %v261
    %v462 = vunpack.c.l.b16 %v262
    %v463 = vunpack.c.l.b16 %v263
    %v464 = vunpack.c.l.b16 %v264
    %v465 = vunpack.c.l.b16 %v265
    %v466 = vunpack.c.l.b16 %v266
    %v467 = vunpack.c.l.b16 %v267
    %v468 = vunpack.c.l.b16 %v268
    %v469 = vunpack.c.l.b16 %v269
    %v470 = vunpack.c.l.b16 %v270
    %v471 = vunpack.c.l.b16 %v271
    %v472 = vunpack.c.l.b16 %v272
    %v473 = vunpack.c.l.b16 %v273
    %v474 = vunpack.c.l.b16 %v274
    %v475 = vunpack.c.l.b16 %v275
    %v476 = vunpack.c.l.b16 %v276
    %v477 = vunpack.c.l.b16 %v277
    %v478 = vunpack.c.l.b16 %v278
    %v479 = vunpack.c.l.b16 %v279
    %v480 = vunpack.c.l.b16 %v280
    %v481 = vunpack.c.l.b16 %v281
    %v482 = vunpack.c.l.b16 %v282
    %v483 = vunpack.c.l.b16 %v283
    %v484 = vunpack.c.l.b16 %v284
    %v485 = vunpack.c.l.b16 %v285
    %v486 = vunpack.c.l.b16 %v286
    %v487 = vunpack.c.l.b16 %v287
    %v488 = vunpack.c.l.b16 %v288
    %v489 = vunpack.c.l.b16 %v289
    %v490 = vunpack.c.l.b16 %v290
    %v491 = vunpack.c.l.b16 %v291
    %v492 = vunpack.c.l.b16 %v292
    %v493 = vunpack.c.l.b16 %v293
    %v494 = vunpack.c.l.b16 %v294
    %v495 = vunpack.c.l.b16 %v295
    %v496 = vunpack.c.l.b16 %v296
    %v497 = vunpack.c.l.b16 %v297
    %v498 = vunpack.c.l.b16 %v298
    %v499 = vunpack.c.l.b16 %v299
    %v500 = vpack.c.b16 %v403, %v402
    %v501 = vpack.c.b16 %v405, %v404
    %v502 = vpack.c.b16 %v407, %v406
    %v503 = vpack.c.b16 %v409, %v408
    %v504 = vpack.c.b16 %v411, %v410
    %v505 = vpack.c.b16 %v413, %v412
    %v506 = vpack.c.b16 %v415, %v414
    %v507 = vpack.c.b16 %v417, %v416
    %v508 = vpack.c.b16 %v419, %v418
    %v509 = vpack.c.b16 %v421, %v420
    %v510 = vpack.c.b16 %v423, %v422
    %v511 = vpack.c.b16 %v425, %v424
    %v512 = vpack.c.b16 %v427, %v426
    %v513 = vpack.c.b16 %v429, %v428
    %v514 = vpack.c.b16 %v431, %v430
    %v515 = vpack.c.b16 %v433, %v432
    %v516 = vpack.c.b16 %v435, %v434
    %v517 = vpack.c.b16 %v437, %v436
    %v518 = vpack.c.b16 %v439, %v438
    %v519 = vpack.c.b16 %v441, %v440
    %v520 = vpack.c.b16 %v443, %v442
    %v521 = vpack.c.b16 %v445, %v444
    %v522 = vpack.c.b16 %v447, %v446
    %v523 = vpack.c.b16 %v449, %v448
    %v524 = vpack.c.b16 %v451, %v450
    %v525 = vpack.c.b16 %v453, %v452
    %v526 = vpack.c.b16 %v455, %v454
    %v527 = vpack.c.b16 %v457, %v456
    %v528 = vpack.c.b16 %v459, %v458
    %v529 = vpack.c.b16 %v461, %v460
    %v530 = vpack.c.b16 %v463, %v462
    %v531 = vpack.c.b16 %v465, %v464
    %v532 = vpack.c.b16 %v467, %v466
    %v533 = vpack.c.b16 %v469, %v468
    %v534 = vpack.c.b16 %v471, %v470
    %v535 = vpack.c.b16 %v473, %v472
    %v536 = vpack.c.b16 %v475, %v474
    %v537 = vpack.c.b16 %v477, %v476
    %v538 = vpack.c.b16 %v479, %v478
    %v539 = vpack.c.b16 %v481, %v480
    %v540 = vpack.c.b16 %v483, %v482
    %v541 = vpack.c.b16 %v485, %v484
    %v542 = vpack.c.b16 %v487, %v486
    %v543 = vpack.c.b16 %v489, %v488
    %v544 = vpack.c.b16 %v491, %v490
    %v545 = vpack.c.b16 %v493, %v492
    %v546 = vpack.c.b16 %v495, %v494
    %v547 = vpack.c.b16 %v497, %v496
    %v548 = vpack.c.b16 %v499, %v498
    %vm598 = vcmask 130048
    %v600 = vsel %vm598, %v201, 0
    %602 = vmatpush.bf16.msra.mxu0 %v507
    %603 = vmatpush.bf16.msra.mxu0 %v506
    %604 = vmatpush.bf16.msra.mxu0 %v505
    %605 = vmatpush.bf16.msra.mxu0 %v504
    %606 = vmatpush.bf16.msra.mxu0 %v503
    %607 = vmatpush.bf16.msra.mxu0 %v502
    %608 = vmatpush.bf16.msra.mxu0 %v501
    %609 = vmatpush.bf16.msra.mxu0 %v500
    %610 = vmatmul.bf16.gmra.mxu0 %v195
    %v611 = vpop.f32.mrf.mxu0
    %v612 = vadd.f32 %v302, %v611
    %v613 = vpop.f32.mrf.mxu0
    %v614 = vadd.f32 %v302, %v613
    %615 = vdwg.mxu0
    %616 = vmatpush.bf16.msra.mxu0 %v515
    %617 = vmatpush.bf16.msra.mxu0 %v514
    %618 = vmatpush.bf16.msra.mxu0 %v513
    %619 = vmatpush.bf16.msra.mxu0 %v512
    %620 = vmatpush.bf16.msra.mxu0 %v511
    %621 = vmatpush.bf16.msra.mxu0 %v510
    %622 = vmatpush.bf16.msra.mxu0 %v509
    %623 = vmatpush.bf16.msra.mxu0 %v508
    %624 = vmatmul.bf16.gmra.mxu0 %v196
    %v625 = vpop.f32.mrf.mxu0
    %v626 = vadd.f32 %v612, %v625
    %v627 = vpop.f32.mrf.mxu0
    %v628 = vadd.f32 %v614, %v627
    %629 = vdwg.mxu0
    %630 = vmatpush.bf16.msra.mxu0 %v523
    %631 = vmatpush.bf16.msra.mxu0 %v522
    %632 = vmatpush.bf16.msra.mxu0 %v521
    %633 = vmatpush.bf16.msra.mxu0 %v520
    %634 = vmatpush.bf16.msra.mxu0 %v519
    %635 = vmatpush.bf16.msra.mxu0 %v518
    %636 = vmatpush.bf16.msra.mxu0 %v517
    %637 = vmatpush.bf16.msra.mxu0 %v516
    %638 = vmatmul.bf16.gmra.mxu0 %v197
    %v639 = vpop.f32.mrf.mxu0
    %v640 = vadd.f32 %v626, %v639
    %v641 = vpop.f32.mrf.mxu0
    %v642 = vadd.f32 %v628, %v641
    %643 = vdwg.mxu0
    %644 = vmatpush.bf16.msra.mxu0 %v531
    %645 = vmatpush.bf16.msra.mxu0 %v530
    %646 = vmatpush.bf16.msra.mxu0 %v529
    %647 = vmatpush.bf16.msra.mxu0 %v528
    %648 = vmatpush.bf16.msra.mxu0 %v527
    %649 = vmatpush.bf16.msra.mxu0 %v526
    %650 = vmatpush.bf16.msra.mxu0 %v525
    %651 = vmatpush.bf16.msra.mxu0 %v524
    %652 = vmatmul.bf16.gmra.mxu0 %v198
    %v653 = vpop.f32.mrf.mxu0
    %v654 = vadd.f32 %v640, %v653
    %v655 = vpop.f32.mrf.mxu0
    %v656 = vadd.f32 %v642, %v655
    %657 = vdwg.mxu0
    %658 = vmatpush.bf16.msra.mxu0 %v539
    %659 = vmatpush.bf16.msra.mxu0 %v538
    %660 = vmatpush.bf16.msra.mxu0 %v537
    %661 = vmatpush.bf16.msra.mxu0 %v536
    %662 = vmatpush.bf16.msra.mxu0 %v535
    %663 = vmatpush.bf16.msra.mxu0 %v534
    %664 = vmatpush.bf16.msra.mxu0 %v533
    %665 = vmatpush.bf16.msra.mxu0 %v532
    %666 = vmatmul.bf16.gmra.mxu0 %v199
    %v667 = vpop.f32.mrf.mxu0
    %v668 = vadd.f32 %v654, %v667
    %v669 = vpop.f32.mrf.mxu0
    %v670 = vadd.f32 %v656, %v669
    %671 = vdwg.mxu0
    %672 = vmatpush.bf16.msra.mxu0 %v547
    %673 = vmatpush.bf16.msra.mxu0 %v546
    %674 = vmatpush.bf16.msra.mxu0 %v545
    %675 = vmatpush.bf16.msra.mxu0 %v544
    %676 = vmatpush.bf16.msra.mxu0 %v543
    %677 = vmatpush.bf16.msra.mxu0 %v542
    %678 = vmatpush.bf16.msra.mxu0 %v541
    %679 = vmatpush.bf16.msra.mxu0 %v540
    %680 = vmatmul.bf16.gmra.mxu0 %v200
    %v681 = vpop.f32.mrf.mxu0
    %v682 = vadd.f32 %v668, %v681
    %v683 = vpop.f32.mrf.mxu0
    %v684 = vadd.f32 %v670, %v683
    %685 = vdwg.mxu0
    %686 = vmatpush.bf16.msra.mxu0 0
    %687 = vmatpush.bf16.msra.mxu0 0
    %688 = vmatpush.bf16.msra.mxu0 0
    %689 = vmatpush.bf16.msra.mxu0 0
    %690 = vmatpush.bf16.msra.mxu0 0
    %691 = vmatpush.bf16.msra.mxu0 0
    %692 = vmatpush.bf16.msra.mxu0 0
    %693 = vmatpush.bf16.msra.mxu0 %v548
    %694 = vmatmul.bf16.gmra.mxu0 %v600
    %v695 = vpop.f32.mrf.mxu0
    %v696 = vadd.f32 %v682, %v695
    %v697 = vpop.f32.mrf.mxu0
    %v698 = vadd.f32 %v684, %v697
    %699 = vdwg.mxu0
    %v700 = vmax.f32 %v696, 0.0
    %v701 = vmax.f32 %v698, 0.0
    %v702 = vpack.c.bf16 %v701, %v700
    %v703 = vld [vmem:[#allocation7] sm:$0xf]
    %v704 = vld [vmem:[#allocation7 + $0x4] sm:$0xf]
    %v705 = vld [vmem:[#allocation7 + $0x8] sm:$0xf]
    %v706 = vld [vmem:[#allocation7 + $0xc] sm:$0xf]
    %v707 = vld [vmem:[#allocation7 + $0x10] sm:$0xf]
    %v708 = vld [vmem:[#allocation7 + $0x14] sm:$0xf]
    %v709 = vld [vmem:[#allocation7 + $0x18] sm:$0xf]
    %v710 = vld [vmem:[#allocation7 + $0x1c] sm:$0xf]
    %v711 = vld [vmem:[#allocation7 + $0x20] sm:$0xf]
    %v712 = vld [vmem:[#allocation7 + $0x24] sm:$0xf]
    %v713 = vld [vmem:[#allocation7 + $0x28] sm:$0xf]
    %v714 = vld [vmem:[#allocation7 + $0x2c] sm:$0xf]
    %v715 = vld [vmem:[#allocation7 + $0x30] sm:$0xf]
    %v716 = vld [vmem:[#allocation7 + $0x34] sm:$0xf]
    %v717 = vld [vmem:[#allocation7 + $0x38] sm:$0xf]
    %v718 = vld [vmem:[#allocation7 + $0x3c] sm:$0xf]
    %v719 = vld [vmem:[%s4] sm:$0x1]
    %v721 = vperm.slane %v719, 0
    %v739 = vunpack.c.l.b16 %v703
    %v740 = vunpack.c.l.b16 %v704
    %v741 = vunpack.c.l.b16 %v705
    %v742 = vunpack.c.l.b16 %v706
    %v743 = vunpack.c.l.b16 %v707
    %v744 = vunpack.c.l.b16 %v708
    %v745 = vunpack.c.l.b16 %v709
    %v746 = vunpack.c.l.b16 %v710
    %v747 = vunpack.c.l.b16 %v711
    %v748 = vunpack.c.l.b16 %v712
    %v749 = vunpack.c.l.b16 %v713
    %v750 = vunpack.c.l.b16 %v714
    %v751 = vunpack.c.l.b16 %v715
    %v752 = vunpack.c.l.b16 %v716
    %v753 = vunpack.c.l.b16 %v717
    %v754 = vunpack.c.l.b16 %v718
    %v755 = vpack.c.b16 %v740, %v739
    %v756 = vpack.c.b16 %v742, %v741
    %v757 = vpack.c.b16 %v744, %v743
    %v758 = vpack.c.b16 %v746, %v745
    %v759 = vpack.c.b16 %v748, %v747
    %v760 = vpack.c.b16 %v750, %v749
    %v761 = vpack.c.b16 %v752, %v751
    %v762 = vpack.c.b16 %v754, %v753
    %771 = vmatpush.bf16.msra.mxu0 %v762
    %772 = vmatpush.bf16.msra.mxu0 %v761
    %773 = vmatpush.bf16.msra.mxu0 %v760
    %774 = vmatpush.bf16.msra.mxu0 %v759
    %775 = vmatpush.bf16.msra.mxu0 %v758
    %776 = vmatpush.bf16.msra.mxu0 %v757
    %777 = vmatpush.bf16.msra.mxu0 %v756
    %778 = vmatpush.bf16.msra.mxu0 %v755
    %779 = vmatmul.bf16.gmra.mxu0 %v702
    %v780 = vpop.f32.mrf.mxu0
    %v781 = vadd.f32 %v721, %v780
    %v782 = vpop.f32.mrf.mxu0
    %v783 = vadd.f32 %v721, %v782
    %784 = vdwg.mxu0
    %v785 = vmax.f32 %v781, 0.0
    %v786 = vmax.f32 %v783, 0.0
    %v787 = vpack.c.bf16 %v786, %v785
    %v788 = vld [vmem:[#allocation8] sm:$0xf]
    %v789 = vld [vmem:[#allocation8 + $0x4] sm:$0xf]
    %v790 = vld [vmem:[#allocation8 + $0x8] sm:$0xf]
    %v791 = vld [vmem:[#allocation8 + $0xc] sm:$0xf]
    %v792 = vld [vmem:[#allocation8 + $0x10] sm:$0xf]
    %v793 = vld [vmem:[#allocation8 + $0x14] sm:$0xf]
    %v794 = vld [vmem:[#allocation8 + $0x18] sm:$0xf]
    %v795 = vld [vmem:[#allocation8 + $0x1c] sm:$0xf]
    %v796 = vld [vmem:[#allocation8 + $0x20] sm:$0xf]
    %v797 = vld [vmem:[#allocation8 + $0x24] sm:$0xf]
    %v798 = vld [vmem:[#allocation8 + $0x28] sm:$0xf]
    %v799 = vld [vmem:[#allocation8 + $0x2c] sm:$0xf]
    %v800 = vld [vmem:[#allocation8 + $0x30] sm:$0xf]
    %v801 = vld [vmem:[#allocation8 + $0x34] sm:$0xf]
    %v802 = vld [vmem:[#allocation8 + $0x38] sm:$0xf]
    %v803 = vld [vmem:[#allocation8 + $0x3c] sm:$0xf]
    %v804 = vld [vmem:[%s6] sm:$0x1]
    %v806 = vperm.slane %v804, 0
    %v824 = vunpack.c.l.b16 %v788
    %v825 = vunpack.c.l.b16 %v789
    %v826 = vunpack.c.l.b16 %v790
    %v827 = vunpack.c.l.b16 %v791
    %v828 = vunpack.c.l.b16 %v792
    %v829 = vunpack.c.l.b16 %v793
    %v830 = vunpack.c.l.b16 %v794
    %v831 = vunpack.c.l.b16 %v795
    %v832 = vunpack.c.l.b16 %v796
    %v833 = vunpack.c.l.b16 %v797
    %v834 = vunpack.c.l.b16 %v798
    %v835 = vunpack.c.l.b16 %v799
    %v836 = vunpack.c.l.b16 %v800
    %v837 = vunpack.c.l.b16 %v801
    %v838 = vunpack.c.l.b16 %v802
    %v839 = vunpack.c.l.b16 %v803
    %v840 = vpack.c.b16 %v825, %v824
    %v841 = vpack.c.b16 %v827, %v826
    %v842 = vpack.c.b16 %v829, %v828
    %v843 = vpack.c.b16 %v831, %v830
    %v844 = vpack.c.b16 %v833, %v832
    %v845 = vpack.c.b16 %v835, %v834
    %v846 = vpack.c.b16 %v837, %v836
    %v847 = vpack.c.b16 %v839, %v838
    %856 = vmatpush.bf16.msra.mxu0 %v847
    %857 = vmatpush.bf16.msra.mxu0 %v846
    %858 = vmatpush.bf16.msra.mxu0 %v845
    %859 = vmatpush.bf16.msra.mxu0 %v844
    %860 = vmatpush.bf16.msra.mxu0 %v843
    %861 = vmatpush.bf16.msra.mxu0 %v842
    %862 = vmatpush.bf16.msra.mxu0 %v841
    %863 = vmatpush.bf16.msra.mxu0 %v840
    %864 = vmatmul.bf16.gmra.mxu0 %v787
    %v865 = vpop.f32.mrf.mxu0
    %v866 = vadd.f32 %v806, %v865
    %v867 = vpop.f32.mrf.mxu0
    %v868 = vadd.f32 %v806, %v867
    %869 = vdwg.mxu0
    %v870 = vmax.f32 %v866, 0.0
    %v871 = vmax.f32 %v868, 0.0
    %v872 = vpack.c.bf16 %v871, %v870
    %v873 = vld [vmem:[#allocation10] sm:$0xf]
    %v874 = vld [vmem:[#allocation10 + $0x4] sm:$0xf]
    %v875 = vld [vmem:[#allocation10 + $0x8] sm:$0xf]
    %v876 = vld [vmem:[#allocation10 + $0xc] sm:$0xf]
    %v877 = vld [vmem:[#allocation10 + $0x10] sm:$0xf]
    %v878 = vld [vmem:[#allocation10 + $0x14] sm:$0xf]
    %v879 = vld [vmem:[#allocation10 + $0x18] sm:$0xf]
    %v880 = vld [vmem:[#allocation10 + $0x1c] sm:$0xf]
    %v881 = vld [vmem:[#allocation10 + $0x20] sm:$0xf]
    %v882 = vld [vmem:[#allocation10 + $0x24] sm:$0xf]
    %v883 = vld [vmem:[#allocation10 + $0x28] sm:$0xf]
    %v884 = vld [vmem:[#allocation10 + $0x2c] sm:$0xf]
    %v885 = vld [vmem:[#allocation10 + $0x30] sm:$0xf]
    %v886 = vld [vmem:[#allocation10 + $0x34] sm:$0xf]
    %v887 = vld [vmem:[#allocation10 + $0x38] sm:$0xf]
    %v888 = vld [vmem:[#allocation10 + $0x3c] sm:$0xf]
    %v889 = vld [vmem:[%s8] sm:$0x1]
    %v891 = vperm.slane %v889, 0
    %v909 = vunpack.c.l.b16 %v873
    %v910 = vunpack.c.l.b16 %v874
    %v911 = vunpack.c.l.b16 %v875
    %v912 = vunpack.c.l.b16 %v876
    %v913 = vunpack.c.l.b16 %v877
    %v914 = vunpack.c.l.b16 %v878
    %v915 = vunpack.c.l.b16 %v879
    %v916 = vunpack.c.l.b16 %v880
    %v917 = vunpack.c.l.b16 %v881
    %v918 = vunpack.c.l.b16 %v882
    %v919 = vunpack.c.l.b16 %v883
    %v920 = vunpack.c.l.b16 %v884
    %v921 = vunpack.c.l.b16 %v885
    %v922 = vunpack.c.l.b16 %v886
    %v923 = vunpack.c.l.b16 %v887
    %v924 = vunpack.c.l.b16 %v888
    %v925 = vpack.c.b16 %v910, %v909
    %v926 = vpack.c.b16 %v912, %v911
    %v927 = vpack.c.b16 %v914, %v913
    %v928 = vpack.c.b16 %v916, %v915
    %v929 = vpack.c.b16 %v918, %v917
    %v930 = vpack.c.b16 %v920, %v919
    %v931 = vpack.c.b16 %v922, %v921
    %v932 = vpack.c.b16 %v924, %v923
    %941 = vmatpush.bf16.msra.mxu0 %v932
    %942 = vmatpush.bf16.msra.mxu0 %v931
    %943 = vmatpush.bf16.msra.mxu0 %v930
    %944 = vmatpush.bf16.msra.mxu0 %v929
    %945 = vmatpush.bf16.msra.mxu0 %v928
    %946 = vmatpush.bf16.msra.mxu0 %v927
    %947 = vmatpush.bf16.msra.mxu0 %v926
    %948 = vmatpush.bf16.msra.mxu0 %v925
    %949 = vmatmul.bf16.gmra.mxu0 %v872
    %v950 = vpop.f32.mrf.mxu0
    %v951 = vadd.f32 %v891, %v950
    %v952 = vpop.f32.mrf.mxu0
    %v953 = vadd.f32 %v891, %v952
    %954 = vdwg.mxu0
    %955 = vst.msk [vmem:[#allocation11] sm:$0xff] %vm598, %v951
    %956 = vst.msk [vmem:[#allocation11 + $0x8] sm:$0xff] %vm598, %v953
    // Predicated region
    $region58: #{tpu_custom_call.1} parent=1 // pred_check
      _
    $region59: #{tpu_custom_call.1} parent=1 // pred_check_branch
      %958 = sbr.rel (0) target = $region61
    $region60: #{tpu_custom_call.1} parent=1 // pred_region
      %960 = vsyncadd [#allocation4], 224
      %s961 = sshll.u32 [#allocation11], 4
      %s962 = int_to_ptr.vmem [resolvable:$true] %s961
      %s963 = sshll.u32 %s9, 4
      %s964 = int_to_ptr.hbm [resolvable:$true] %s963
      %969 = dma.vmem_to_hbm [thread:$0]  %s962, 32, %s964, [#allocation4], 32, 32, 2
    $region61: #{tpu_custom_call.1} parent=1 // pred_fallthru
      _
    // Predicated region
    $region62: #{tpu_custom_call.1} parent=1 // pred_check
      _
    $region63: #{tpu_custom_call.1} parent=1 // pred_check_branch
      %971 = sbr.rel (0) target = $region65
    $region64: #{tpu_custom_call.1} parent=1 // pred_region
      %973 = dma.done [#allocation4], 256
    $region65: #{tpu_custom_call.1} parent=1 // pred_fallthru
      _
    %974 = vsyncpa [#allocation3], 1
    %975 = vsyncpa [#allocation6], 1
    %976 = vsyncpa [#allocation9], 1
    %977 = vsyncpa [#allocation4], 1

</llo_original>
